<compile_context>
chip_gen: v7x
topology: tpu7x:2x2x1
jax: 0.10.0
libtpu: 0.0.40
codegen_flags: <defaults>
</compile_context>

<pallas_src>
import jax
import jax.numpy as jnp
from jax import lax
from jax.experimental import pallas as pl
from jax.experimental.pallas import tpu as pltpu

# ---- model dims (match the PyTorch module) ----------------------------------
EMBEDDING_DIM = 300          # embedding_dimension
HIDDEN_DIM = 50              # hidden_layer_dimension
NUM_CLASSES = 4              # last_linear out_features
VOCAB_SIZE = 100             # oov_id + 1 (word_dict is synthetic here)


def _make_rnn_kernel(activation: str, seq_len: int, batch: int):
    if activation == "tanh":
        act = jnp.tanh
    elif activation == "relu":
        act = lambda v: jnp.maximum(v, 0.0)
    else:
        raise ValueError(f"unsupported nonlinearity: {activation}")

    T, B, H = seq_len, batch, HIDDEN_DIM

    def kernel(t_sel_ref,            # scalar prefetch (SMEM): selected time idx
               x_ref,                # (T*B, E) time-major embedded input
               wih_ref,              # (E, H)
               whh_ref,              # (H, H)
               b_ref,                # (1, H)  = b_ih + b_hh
               wout_ref,             # (H, C)
               bout_ref,             # (1, C)
               y_ref,                # (B, C)  output
               xproj_ref):           # (T*B, H) VMEM scratch
        # ---- hoisted input projection: one MXU call for all T steps ----------
        xproj_ref[...] = (
            jnp.dot(x_ref[...], wih_ref[...], preferred_element_type=jnp.float32)
            + b_ref[...])

        whh = whh_ref[...]                       # hoist weight load out of loop
        n_steps = t_sel_ref[0] + 1               # later steps can't affect y

        def step(t, h):
            x_t = xproj_ref[pl.ds(t * B, B), :]              # (B, H)
            return act(x_t + jnp.dot(h, whh,
                                     preferred_element_type=jnp.float32))

        h_final = lax.fori_loop(0, n_steps, step,
                                jnp.zeros((B, H), jnp.float32))

        # ---- epilogue: single projection + single (lane-masked) store --------
        y_ref[...] = (
            jnp.dot(h_final, wout_ref[...], preferred_element_type=jnp.float32)
            + bout_ref[...]).astype(y_ref.dtype)

    return kernel


def my_rnn_forward(tokens, v_len, params, activation="tanh"):
    """tokens: (B, T) int32, v_len: (B,) int32 -> (B, NUM_CLASSES) float32."""
    B, T = tokens.shape
    E, H, C = EMBEDDING_DIM, HIDDEN_DIM, NUM_CLASSES

    # Embedding gather directly in time-major flattened order (t*B + b rows);
    # padding_idx=0 row of the table is zero, matching nn.Embedding(padding_idx=0).
    flat_ids = tokens.T.reshape(-1)                                # (T*B,)
    x_flat = jnp.take(params["embedding"], flat_ids, axis=0).astype(jnp.float32)

    # PyTorch indexes output_layers[:, max(0, int(v_len[0]) - 1), :]; it would
    # raise for v_len[0] > T -- here we clamp to the last valid step instead.
    t_sel = jnp.clip(v_len[0].astype(jnp.int32) - 1, 0, T - 1).reshape((1,))

    wih = params["w_ih"]                                           # (E, H)
    whh = params["w_hh"]                                           # (H, H)
    b = (params["b_ih"] + params["b_hh"]).reshape(1, H)            # (1, H)
    wout = params["w_out"]                                         # (H, C)
    bout = params["b_out"].reshape(1, C)                           # (1, C)

    grid_spec = pltpu.PrefetchScalarGridSpec(
        num_scalar_prefetch=1,
        grid=(1,),                       # single step: recurrence loops in-kernel
        in_specs=[
            pl.BlockSpec((T * B, E), lambda i, tsel: (0, 0)),
            pl.BlockSpec((E, H), lambda i, tsel: (0, 0)),
            pl.BlockSpec((H, H), lambda i, tsel: (0, 0)),
            pl.BlockSpec((1, H), lambda i, tsel: (0, 0)),
            pl.BlockSpec((H, C), lambda i, tsel: (0, 0)),
            pl.BlockSpec((1, C), lambda i, tsel: (0, 0)),
        ],
        out_specs=pl.BlockSpec((B, C), lambda i, tsel: (0, 0)),
        scratch_shapes=[pltpu.VMEM((T * B, H), jnp.float32)],
    )

    y = pl.pallas_call(
        _make_rnn_kernel(activation, T, B),
        out_shape=jax.ShapeDtypeStruct((B, C), jnp.float32),
        grid_spec=grid_spec,
        compiler_params=pltpu.CompilerParams(
            dimension_semantics=("arbitrary",)),   # recurrence is sequential
    )(t_sel, x_flat, wih, whh, b, wout, bout)
    return y


def reference_forward(tokens, v_len, params, activation="tanh"):
    """Pure-JAX reference mirroring the PyTorch forward."""
    act = jnp.tanh if activation == "tanh" else (lambda v: jnp.maximum(v, 0.0))
    emb = jnp.take(params["embedding"], tokens, axis=0)            # (B, T, E)
    B, T, _ = emb.shape
    h = jnp.zeros((B, HIDDEN_DIM), jnp.float32)
    outs = []
    for t in range(T):
        h = act(emb[:, t, :] @ params["w_ih"] + h @ params["w_hh"]
                + params["b_ih"] + params["b_hh"])
        outs.append(h)
    outs = jnp.stack(outs, axis=1)                                 # (B, T, H)
    t_sel = max(0, int(v_len[0]) - 1)
    sel = outs[:, t_sel, :]                                        # temp_y[0]
    return sel @ params["w_out"] + params["b_out"]


def init_params(key):
    ks = jax.random.split(key, 6)
    emb = 0.1 * jax.random.normal(ks[0], (VOCAB_SIZE, EMBEDDING_DIM), jnp.float32)
    emb = emb.at[0].set(0.0)                        # padding_idx=0
    return {
        "embedding": emb,
        "w_ih": 0.1 * jax.random.normal(ks[1], (EMBEDDING_DIM, HIDDEN_DIM), jnp.float32),
        "w_hh": 0.1 * jax.random.normal(ks[2], (HIDDEN_DIM, HIDDEN_DIM), jnp.float32),
        "b_ih": 0.1 * jax.random.normal(ks[3], (HIDDEN_DIM,), jnp.float32),
        "b_hh": 0.1 * jax.random.normal(ks[4], (HIDDEN_DIM,), jnp.float32),
        "w_out": 0.1 * jax.random.normal(ks[5], (HIDDEN_DIM, NUM_CLASSES), jnp.float32),
        "b_out": jnp.zeros((NUM_CLASSES,), jnp.float32),
    }


if __name__ == "__main__":
    key = jax.random.PRNGKey(0)
    pkey, tkey = jax.random.split(key)
    params = init_params(pkey)

    B, T = 2, 8
    tokens = jax.random.randint(tkey, (B, T), 1, VOCAB_SIZE, dtype=jnp.int32)
    tokens = tokens.at[0, 6:].set(0)                # some padding
    v_len = jnp.array([6, 8], dtype=jnp.int32)      # forward only uses v_len[0]

    y = my_rnn_forward(tokens, v_len, params, activation="tanh")
    y = jax.block_until_ready(y)

    y_ref = reference_forward(tokens, v_len, params, activation="tanh")
    assert y.shape == (B, NUM_CLASSES)
    assert jnp.allclose(y, y_ref, rtol=1e-4, atol=1e-4), (y, y_ref)

    print("KERNEL_OK")
</pallas_src>

<mosaic_0001>
module attributes {stable_mosaic.version = 11 : i64} {
  func.func @kernel(%arg0: i32, %arg1: memref<1xi32, #tpu.memory_space<smem>>, %arg2: memref<16x300xf32, #tpu.memory_space<vmem>>, %arg3: memref<300x50xf32, #tpu.memory_space<vmem>>, %arg4: memref<50x50xf32, #tpu.memory_space<vmem>>, %arg5: memref<1x50xf32, #tpu.memory_space<vmem>>, %arg6: memref<50x4xf32, #tpu.memory_space<vmem>>, %arg7: memref<1x4xf32, #tpu.memory_space<vmem>>, %arg8: memref<2x4xf32, #tpu.memory_space<vmem>>, %arg9: memref<16x50xf32, #tpu.memory_space<vmem>>) attributes {dimension_semantics = [#tpu.dimension_semantics<arbitrary>], iteration_bounds = array<i64: 1>, scalar_prefetch = 1 : i64, scratch_operands = 1 : i64, tpu.core_type = #tpu.core_type<tc>, window_params = [{pipeline_mode = #tpu.pipeline_mode<synchronous>, transform_indices = @transform_0, window_bounds = array<i64: 16, 300>}, {pipeline_mode = #tpu.pipeline_mode<synchronous>, transform_indices = @transform_1, window_bounds = array<i64: 300, 50>}, {pipeline_mode = #tpu.pipeline_mode<synchronous>, transform_indices = @transform_2, window_bounds = array<i64: 50, 50>}, {pipeline_mode = #tpu.pipeline_mode<synchronous>, transform_indices = @transform_3, window_bounds = array<i64: 1, 50>}, {pipeline_mode = #tpu.pipeline_mode<synchronous>, transform_indices = @transform_4, window_bounds = array<i64: 50, 4>}, {pipeline_mode = #tpu.pipeline_mode<synchronous>, transform_indices = @transform_5, window_bounds = array<i64: 1, 4>}, {pipeline_mode = #tpu.pipeline_mode<synchronous>, transform_indices = @transform_6, window_bounds = array<i64: 2, 4>}]} {
    %c0 = arith.constant 0 : index
    %c0_0 = arith.constant 0 : index
    %0 = vector.load %arg2[%c0, %c0_0] : memref<16x300xf32, #tpu.memory_space<vmem>>, vector<16x300xf32>
    %c0_1 = arith.constant 0 : index
    %c0_2 = arith.constant 0 : index
    %1 = vector.load %arg3[%c0_1, %c0_2] : memref<300x50xf32, #tpu.memory_space<vmem>>, vector<300x50xf32>
    %cst = arith.constant dense<0.000000e+00> : vector<16x50xf32>
    %2 = tpu.matmul %0, %1, %cst {dimension_numbers = #tpu.dot_dimension_numbers<[1], [0], [0], [1], [0, 0, 1, 1], [], []>} : vector<16x300xf32>, vector<300x50xf32>, vector<16x50xf32> -> vector<16x50xf32>
    %c0_3 = arith.constant 0 : index
    %c0_4 = arith.constant 0 : index
    %3 = vector.load %arg5[%c0_3, %c0_4] : memref<1x50xf32, #tpu.memory_space<vmem>>, vector<1x50xf32>
    %4 = vector.broadcast %3 : vector<1x50xf32> to vector<16x50xf32>
    %5 = arith.addf %2, %4 : vector<16x50xf32>
    %c0_5 = arith.constant 0 : index
    %c0_6 = arith.constant 0 : index
    %6 = vector.load %arg9[%c0_5, %c0_6] : memref<16x50xf32, #tpu.memory_space<vmem>>, vector<16x50xf32>
    tpu.vector_store %arg9[%c0_5, %c0_6], %5 {strides = array<i32>} : memref<16x50xf32, #tpu.memory_space<vmem>>, vector<16x50xf32>,
    %c0_7 = arith.constant 0 : index
    %c0_8 = arith.constant 0 : index
    %7 = vector.load %arg4[%c0_7, %c0_8] : memref<50x50xf32, #tpu.memory_space<vmem>>, vector<50x50xf32>
    %c0_9 = arith.constant 0 : index
    %8 = memref.load %arg1[%c0_9] : memref<1xi32, #tpu.memory_space<smem>>
    %c1_i32 = arith.constant 1 : i32
    %9 = arith.addi %8, %c1_i32 : i32
    %cst_10 = arith.constant 0.000000e+00 : f32
    %10 = vector.broadcast %cst_10 : f32 to vector<2x50xf32>
    %c0_i32 = arith.constant 0 : i32
    %11 = arith.subi %9, %c0_i32 : i32
    %12 = arith.addi %c0_i32, %11 : i32
    %c1_i32_11 = arith.constant 1 : i32
    %13 = scf.for %arg10 = %c0_i32 to %12 step %c1_i32_11 iter_args(%arg11 = %10) -> (vector<2x50xf32>)  : i32 {
      %c2_i32 = arith.constant 2 : i32
      %20 = arith.muli %arg10, %c2_i32 : i32
      %21 = arith.index_cast %20 : i32 to index
      %c0_19 = arith.constant 0 : index
      %22 = vector.load %arg9[%21, %c0_19] : memref<16x50xf32, #tpu.memory_space<vmem>>, vector<2x50xf32>
      %cst_20 = arith.constant dense<0.000000e+00> : vector<2x50xf32>
      %23 = tpu.matmul %arg11, %7, %cst_20 {dimension_numbers = #tpu.dot_dimension_numbers<[1], [0], [0], [1], [0, 0, 1, 1], [], []>} : vector<2x50xf32>, vector<50x50xf32>, vector<2x50xf32> -> vector<2x50xf32>
      %24 = arith.addf %22, %23 : vector<2x50xf32>
      %25 = math.tanh %24 : vector<2x50xf32>
      scf.yield %25 : vector<2x50xf32>
    }
    %c0_12 = arith.constant 0 : index
    %c0_13 = arith.constant 0 : index
    %14 = vector.load %arg6[%c0_12, %c0_13] : memref<50x4xf32, #tpu.memory_space<vmem>>, vector<50x4xf32>
    %cst_14 = arith.constant dense<0.000000e+00> : vector<2x4xf32>
    %15 = tpu.matmul %13, %14, %cst_14 {dimension_numbers = #tpu.dot_dimension_numbers<[1], [0], [0], [1], [0, 0, 1, 1], [], []>} : vector<2x50xf32>, vector<50x4xf32>, vector<2x4xf32> -> vector<2x4xf32>
    %c0_15 = arith.constant 0 : index
    %c0_16 = arith.constant 0 : index
    %16 = vector.load %arg7[%c0_15, %c0_16] : memref<1x4xf32, #tpu.memory_space<vmem>>, vector<1x4xf32>
    %17 = vector.broadcast %16 : vector<1x4xf32> to vector<2x4xf32>
    %18 = arith.addf %15, %17 : vector<2x4xf32>
    %c0_17 = arith.constant 0 : index
    %c0_18 = arith.constant 0 : index
    %19 = vector.load %arg8[%c0_17, %c0_18] : memref<2x4xf32, #tpu.memory_space<vmem>>, vector<2x4xf32>
    tpu.vector_store %arg8[%c0_17, %c0_18], %18 {strides = array<i32>} : memref<2x4xf32, #tpu.memory_space<vmem>>, vector<2x4xf32>,
    return
  }
  func.func @transform_0(%arg0: i32, %arg1: memref<1xi32, #tpu.memory_space<smem>>) -> (i32, i32) {
    %c0_i32 = arith.constant 0 : i32
    %c0_i32_0 = arith.constant 0 : i32
    %c0_i32_1 = arith.constant 0 : i32
    return %c0_i32, %c0_i32_0 : i32, i32
  }
  func.func @transform_1(%arg0: i32, %arg1: memref<1xi32, #tpu.memory_space<smem>>) -> (i32, i32) {
    %c0_i32 = arith.constant 0 : i32
    %c0_i32_0 = arith.constant 0 : i32
    %c0_i32_1 = arith.constant 0 : i32
    return %c0_i32, %c0_i32_0 : i32, i32
  }
  func.func @transform_2(%arg0: i32, %arg1: memref<1xi32, #tpu.memory_space<smem>>) -> (i32, i32) {
    %c0_i32 = arith.constant 0 : i32
    %c0_i32_0 = arith.constant 0 : i32
    %c0_i32_1 = arith.constant 0 : i32
    return %c0_i32, %c0_i32_0 : i32, i32
  }
  func.func @transform_3(%arg0: i32, %arg1: memref<1xi32, #tpu.memory_space<smem>>) -> (i32, i32) {
    %c0_i32 = arith.constant 0 : i32
    %c0_i32_0 = arith.constant 0 : i32
    %c0_i32_1 = arith.constant 0 : i32
    return %c0_i32, %c0_i32_0 : i32, i32
  }
  func.func @transform_4(%arg0: i32, %arg1: memref<1xi32, #tpu.memory_space<smem>>) -> (i32, i32) {
    %c0_i32 = arith.constant 0 : i32
    %c0_i32_0 = arith.constant 0 : i32
    %c0_i32_1 = arith.constant 0 : i32
    return %c0_i32, %c0_i32_0 : i32, i32
  }
  func.func @transform_5(%arg0: i32, %arg1: memref<1xi32, #tpu.memory_space<smem>>) -> (i32, i32) {
    %c0_i32 = arith.constant 0 : i32
    %c0_i32_0 = arith.constant 0 : i32
    %c0_i32_1 = arith.constant 0 : i32
    return %c0_i32, %c0_i32_0 : i32, i32
  }
  func.func @transform_6(%arg0: i32, %arg1: memref<1xi32, #tpu.memory_space<smem>>) -> (i32, i32) {
    %c0_i32 = arith.constant 0 : i32
    %c0_i32_0 = arith.constant 0 : i32
    %c0_i32_1 = arith.constant 0 : i32
    return %c0_i32, %c0_i32_0 : i32, i32
  }
}

</mosaic_0001>

<llo_original>
// kernel: tpu_custom_call.1
$region0: #{tpu_custom_call.1}
  #allocation0 [shape = 'u32[]', space=smem, size = 0x4, offset = 0x4, fixed_abs, tag = 'smem constant byte address 0x4 - core index']
  #allocation1 [shape = 'u32[144,128]{1,0:T(1,128)}', space=vmem, size = 0x12000, scoped, tag = 'internal scratch']
  #allocation2 [shape = 'f32[16,50]{1,0:T(8,128)}', space=vmem, size = 0x2000, scoped, tag = 'scratch operand']
  #allocation3 [shape = 's32[1]{0}', space=sflag, size = 0x4, scoped, tag = 'scoped memory for tpu_custom_call.1']
  #allocation4 [shape = 's32[1]{0:T(128)S(6)}', space=smem, size = 0x200, scoped, tag = 'prefetched SMEM operand 0']
  %s0 = inlined_call_operand.<no memory space> [shape: s32[1], index: 0, kind: input, shape index: {}]
  %s1 = inlined_call_operand.vmem [shape: f32[16,300], index: 1, kind: input, shape index: {}]
  %s2 = inlined_call_operand.vmem [shape: f32[300,50], index: 2, kind: input, shape index: {}]
  %s3 = inlined_call_operand.vmem [shape: f32[50,50], index: 3, kind: input, shape index: {}]
  %s4 = inlined_call_operand.vmem [shape: f32[1,50], index: 4, kind: input, shape index: {}]
  %s5 = inlined_call_operand.vmem [shape: f32[50,4], index: 5, kind: input, shape index: {}]
  %s6 = inlined_call_operand.vmem [shape: f32[1,4], index: 6, kind: input, shape index: {}]
  %s7 = inlined_call_operand.hbm [shape: f32[2,4], index: 7, kind: output, shape index: {}]
  %s8 = sld [smem:[#allocation0]]
  $region41: #{tpu_custom_call.1} parent=0
    _
  %s10 = ssub.s32 1, %s8
  %s11 = scalar_select 0, %s10, %s8
  %12 = sst [smem:[#allocation4]] %s0
  $region1: #{tpu_custom_call.1} parent=0
    #allocation5 [shape = 'u8[1024]{0}', space=vmem, size = 0x400, scoped, tag = 'output window, operand 0, single buffered']
    #allocation6 [shape = 's32[1]{0}', space=sflag, size = 0x4, scoped, tag = 'scoped memory for tpu_custom_call.1']
    %13 = vsyncpa [#allocation6], 0
    // Predicated region
    $region2: #{tpu_custom_call.1} parent=1 // pred_check
      _
    $region3: #{tpu_custom_call.1} parent=1 // pred_check_branch
      %15 = sbr.rel (0) target = $region5
    $region4: #{tpu_custom_call.1} parent=1 // pred_region
      _
    $region5: #{tpu_custom_call.1} parent=1 // pred_fallthru
      _
    // Predicated region
    $region6: #{tpu_custom_call.1} parent=1 // pred_check
      _
    $region7: #{tpu_custom_call.1} parent=1 // pred_check_branch
      %17 = sbr.rel (0) target = $region9
    $region8: #{tpu_custom_call.1} parent=1 // pred_region
      _
    $region9: #{tpu_custom_call.1} parent=1 // pred_fallthru
      _
    // Predicated region
    $region10: #{tpu_custom_call.1} parent=1 // pred_check
      _
    $region11: #{tpu_custom_call.1} parent=1 // pred_check_branch
      %19 = sbr.rel (0) target = $region13
    $region12: #{tpu_custom_call.1} parent=1 // pred_region
      _
    $region13: #{tpu_custom_call.1} parent=1 // pred_fallthru
      _
    // Predicated region
    $region14: #{tpu_custom_call.1} parent=1 // pred_check
      _
    $region15: #{tpu_custom_call.1} parent=1 // pred_check_branch
      %21 = sbr.rel (0) target = $region17
    $region16: #{tpu_custom_call.1} parent=1 // pred_region
      _
    $region17: #{tpu_custom_call.1} parent=1 // pred_fallthru
      _
    // Predicated region
    $region18: #{tpu_custom_call.1} parent=1 // pred_check
      _
    $region19: #{tpu_custom_call.1} parent=1 // pred_check_branch
      %23 = sbr.rel (0) target = $region21
    $region20: #{tpu_custom_call.1} parent=1 // pred_region
      _
    $region21: #{tpu_custom_call.1} parent=1 // pred_fallthru
      _
    // Predicated region
    $region22: #{tpu_custom_call.1} parent=1 // pred_check
      _
    $region23: #{tpu_custom_call.1} parent=1 // pred_check_branch
      %25 = sbr.rel (0) target = $region25
    $region24: #{tpu_custom_call.1} parent=1 // pred_region
      _
    $region25: #{tpu_custom_call.1} parent=1 // pred_fallthru
      _
    %v26 = vld [vmem:[%s1] sm:$0xff]
    %v27 = vld [vmem:[%s1 + $0x8] sm:$0xff]
    %v28 = vld [vmem:[%s1 + $0x10] sm:$0xff]
    %v29 = vld [vmem:[%s1 + $0x18] sm:$0xff]
    %v30 = vld [vmem:[%s1 + $0x20] sm:$0xff]
    %v31 = vld [vmem:[%s1 + $0x28] sm:$0xff]
    %v32 = vld [vmem:[%s2] sm:$0xff]
    %v33 = vld [vmem:[%s2 + $0x8] sm:$0xff]
    %v34 = vld [vmem:[%s2 + $0x10] sm:$0xff]
    %v35 = vld [vmem:[%s2 + $0x18] sm:$0xff]
    %v36 = vld [vmem:[%s2 + $0x20] sm:$0xff]
    %v37 = vld [vmem:[%s2 + $0x28] sm:$0xff]
    %v38 = vld [vmem:[%s2 + $0x30] sm:$0xff]
    %v39 = vld [vmem:[%s2 + $0x38] sm:$0xff]
    %v40 = vld [vmem:[%s2 + $0x40] sm:$0xff]
    %v41 = vld [vmem:[%s2 + $0x48] sm:$0xff]
    %v42 = vld [vmem:[%s2 + $0x50] sm:$0xff]
    %v43 = vld [vmem:[%s2 + $0x58] sm:$0xff]
    %v44 = vld [vmem:[%s2 + $0x60] sm:$0xff]
    %v45 = vld [vmem:[%s2 + $0x68] sm:$0xff]
    %v46 = vld [vmem:[%s2 + $0x70] sm:$0xff]
    %v47 = vld [vmem:[%s2 + $0x78] sm:$0xff]
    %v48 = vld [vmem:[%s2 + $0x80] sm:$0xff]
    %v49 = vld [vmem:[%s2 + $0x88] sm:$0xff]
    %v50 = vld [vmem:[%s2 + $0x90] sm:$0xff]
    %v51 = vld [vmem:[%s2 + $0x98] sm:$0xff]
    %v52 = vld [vmem:[%s2 + $0xa0] sm:$0xff]
    %v53 = vld [vmem:[%s2 + $0xa8] sm:$0xff]
    %v54 = vld [vmem:[%s2 + $0xb0] sm:$0xff]
    %v55 = vld [vmem:[%s2 + $0xb8] sm:$0xff]
    %v56 = vld [vmem:[%s2 + $0xc0] sm:$0xff]
    %v57 = vld [vmem:[%s2 + $0xc8] sm:$0xff]
    %v58 = vld [vmem:[%s2 + $0xd0] sm:$0xff]
    %v59 = vld [vmem:[%s2 + $0xd8] sm:$0xff]
    %v60 = vld [vmem:[%s2 + $0xe0] sm:$0xff]
    %v61 = vld [vmem:[%s2 + $0xe8] sm:$0xff]
    %v62 = vld [vmem:[%s2 + $0xf0] sm:$0xff]
    %v63 = vld [vmem:[%s2 + $0xf8] sm:$0xff]
    %v64 = vld [vmem:[%s2 + $0x100] sm:$0xff]
    %v65 = vld [vmem:[%s2 + $0x108] sm:$0xff]
    %v66 = vld [vmem:[%s2 + $0x110] sm:$0xff]
    %v67 = vld [vmem:[%s2 + $0x118] sm:$0xff]
    %v68 = vld [vmem:[%s2 + $0x120] sm:$0xff]
    %v69 = vld [vmem:[%s2 + $0x128] sm:$0xf]
    %v70 = vld [vmem:[%s4] sm:$0x1]
    %v72 = vlaneseq
    %v73 = vshrl.u32 %v72, 7
    %v74 = vsub.s32 0, %v73
    %v75 = vrot.slane %v70, %v74
    %vm77 = vcmask 359424
    %v79 = vsel %vm77, %v28, 0
    %v82 = vsel %vm77, %v31, 0
    %vm84 = vcmask 1043456
    %v86 = vsel %vm84, %v69, 0
    %88 = vmatprep.subr.mxu0 0.0
    %89 = vmatpush1.msra.mxu0 %v32
    %90 = vmatprep.subr.mxu0 0.0
    %91 = vmatpush1.msra.mxu0 %v33
    %92 = vmatprep.subr.mxu0 0.0
    %93 = vmatpush1.msra.mxu0 %v34
    %94 = vmatprep.subr.mxu0 0.0
    %95 = vmatpush1.msra.mxu0 %v35
    %96 = vmatprep.subr.mxu0 0.0
    %97 = vmatpush1.msra.mxu0 %v36
    %98 = vmatprep.subr.mxu0 0.0
    %99 = vmatpush1.msra.mxu0 %v37
    %100 = vmatprep.subr.mxu0 0.0
    %101 = vmatpush1.msra.mxu0 %v38
    %102 = vmatprep.subr.mxu0 0.0
    %103 = vmatpush1.msra.mxu0 %v39
    %104 = vmatprep.subr.mxu0 0.0
    %105 = vmatpush1.msra.mxu0 %v40
    %106 = vmatprep.subr.mxu0 0.0
    %107 = vmatpush1.msra.mxu0 %v41
    %108 = vmatprep.subr.mxu0 0.0
    %109 = vmatpush1.msra.mxu0 %v42
    %110 = vmatprep.subr.mxu0 0.0
    %111 = vmatpush1.msra.mxu0 %v43
    %112 = vmatprep.subr.mxu0 0.0
    %113 = vmatpush1.msra.mxu0 %v44
    %114 = vmatprep.subr.mxu0 0.0
    %115 = vmatpush1.msra.mxu0 %v45
    %116 = vmatprep.subr.mxu0 0.0
    %117 = vmatpush1.msra.mxu0 %v46
    %118 = vmatprep.subr.mxu0 0.0
    %119 = vmatpush1.msra.mxu0 %v47
    %120 = vmatprep.subr.mxu0 0.0
    %121 = vmatpush1.msra.mxu0 %v48
    %122 = vmatprep.subr.mxu0 0.0
    %123 = vmatpush1.msra.mxu0 %v49
    %124 = vmatprep.subr.mxu0 0.0
    %125 = vmatpush1.msra.mxu0 %v50
    %126 = vmatprep.subr.mxu0 0.0
    %127 = vmatpush1.msra.mxu0 %v51
    %128 = vmatprep.subr.mxu0 0.0
    %129 = vmatpush1.msra.mxu0 %v52
    %130 = vmatprep.subr.mxu0 0.0
    %131 = vmatpush1.msra.mxu0 %v53
    %132 = vmatprep.subr.mxu0 0.0
    %133 = vmatpush1.msra.mxu0 %v54
    %134 = vmatprep.subr.mxu0 0.0
    %135 = vmatpush1.msra.mxu0 %v55
    %136 = vmatprep.subr.mxu0 0.0
    %137 = vmatpush1.msra.mxu0 %v56
    %138 = vmatprep.subr.mxu0 0.0
    %139 = vmatpush1.msra.mxu0 %v57
    %140 = vmatprep.subr.mxu0 0.0
    %141 = vmatpush1.msra.mxu0 %v58
    %142 = vmatprep.subr.mxu0 0.0
    %143 = vmatpush1.msra.mxu0 %v59
    %144 = vmatprep.subr.mxu0 0.0
    %145 = vmatpush1.msra.mxu0 %v60
    %146 = vmatprep.subr.mxu0 0.0
    %147 = vmatpush1.msra.mxu0 %v61
    %148 = vmatprep.subr.mxu0 0.0
    %149 = vmatpush1.msra.mxu0 %v62
    %150 = vmatprep.subr.mxu0 0.0
    %151 = vmatpush1.msra.mxu0 %v63
    %152 = vmatprep.mubr.f32.mxu0 %v27
    %153 = vmatmul.mubr.f32.gmra.mrb[0].mxu0 %v26
    %v154 = vpop.f32.mrb[0].mxu0
    %v155 = vadd.f32 %v75, %v154
    %v156 = vpop.f32.mrb[0].mxu0
    %157 = vmatprep.mubr.f32.mxu0 %v30
    %158 = vmatmul.mubr.f32.gmra.mrb[0].mxu0 %v29
    %v159 = vpop.f32.mrb[0].mxu0
    %v160 = vadd.f32 %v75, %v159
    %v161 = vpop.f32.mrb[0].mxu0
    %162 = vdwg.mxu0
    %163 = vmatprep.subr.mxu0 0.0
    %164 = vmatpush1.msra.mxu0 %v64
    %165 = vmatprep.subr.mxu0 0.0
    %166 = vmatpush1.msra.mxu0 %v65
    %167 = vmatprep.subr.mxu0 0.0
    %168 = vmatpush1.msra.mxu0 %v66
    %169 = vmatprep.subr.mxu0 0.0
    %170 = vmatpush1.msra.mxu0 %v67
    %171 = vmatprep.subr.mxu0 0.0
    %172 = vmatpush1.msra.mxu0 %v68
    %173 = vmatprep.subr.mxu0 0.0
    %174 = vmatpush1.msra.mxu0 %v86
    %175 = vmatprep.subr.mxu0 0.0
    %176 = vmatpush1.msra.mxu0 0.0
    %177 = vmatprep.subr.mxu0 0.0
    %178 = vmatpush1.msra.mxu0 0.0
    %179 = vmatprep.subr.mxu0 0.0
    %180 = vmatpush1.msra.mxu0 0.0
    %181 = vmatprep.subr.mxu0 0.0
    %182 = vmatpush1.msra.mxu0 0.0
    %183 = vmatprep.subr.mxu0 0.0
    %184 = vmatpush1.msra.mxu0 0.0
    %185 = vmatprep.subr.mxu0 0.0
    %186 = vmatpush1.msra.mxu0 0.0
    %187 = vmatprep.subr.mxu0 0.0
    %188 = vmatpush1.msra.mxu0 0.0
    %189 = vmatprep.subr.mxu0 0.0
    %190 = vmatpush1.msra.mxu0 0.0
    %191 = vmatprep.subr.mxu0 0.0
    %192 = vmatpush1.msra.mxu0 0.0
    %193 = vmatprep.subr.mxu0 0.0
    %194 = vmatpush1.msra.mxu0 0.0
    %195 = vmatprep.subr.mxu0 0.0
    %196 = vmatpush1.msra.mxu0 0.0
    %197 = vmatprep.subr.mxu0 0.0
    %198 = vmatpush1.msra.mxu0 0.0
    %199 = vmatprep.subr.mxu0 0.0
    %200 = vmatpush1.msra.mxu0 0.0
    %201 = vmatprep.subr.mxu0 0.0
    %202 = vmatpush1.msra.mxu0 0.0
    %203 = vmatprep.subr.mxu0 0.0
    %204 = vmatpush1.msra.mxu0 0.0
    %205 = vmatprep.subr.mxu0 0.0
    %206 = vmatpush1.msra.mxu0 0.0
    %207 = vmatprep.subr.mxu0 0.0
    %208 = vmatpush1.msra.mxu0 0.0
    %209 = vmatprep.subr.mxu0 0.0
    %210 = vmatpush1.msra.mxu0 0.0
    %211 = vmatprep.subr.mxu0 0.0
    %212 = vmatpush1.msra.mxu0 0.0
    %213 = vmatprep.subr.mxu0 0.0
    %214 = vmatpush1.msra.mxu0 0.0
    %215 = vmatprep.subr.mxu0 0.0
    %216 = vmatpush1.msra.mxu0 0.0
    %217 = vmatprep.subr.mxu0 0.0
    %218 = vmatpush1.msra.mxu0 0.0
    %219 = vmatprep.subr.mxu0 0.0
    %220 = vmatpush1.msra.mxu0 0.0
    %221 = vmatprep.subr.mxu0 0.0
    %222 = vmatpush1.msra.mxu0 0.0
    %223 = vmatprep.subr.mxu0 0.0
    %224 = vmatpush1.msra.mxu0 0.0
    %225 = vmatprep.subr.mxu0 0.0
    %226 = vmatpush1.msra.mxu0 0.0
    %227 = vmatprep.mubr.f32.mxu0 0.0
    %228 = vmatmul.mubr.f32.gmra.mrb[0].mxu0 %v79
    %v229 = vpop.f32.mrb[0].mxu0
    %v230 = vadd.f32 %v155, %v229
    %v231 = vpop.f32.mrb[0].mxu0
    %232 = vmatprep.mubr.f32.mxu0 0.0
    %233 = vmatmul.mubr.f32.gmra.mrb[0].mxu0 %v82
    %v234 = vpop.f32.mrb[0].mxu0
    %v235 = vadd.f32 %v160, %v234
    %v236 = vpop.f32.mrb[0].mxu0
    %237 = vdwg.mxu0
    %vm238 = vcmask 408576
    %239 = vst.msk [vmem:[#allocation2] sm:$0xff] %vm238, %v230
    %240 = vst.msk [vmem:[#allocation2 + $0x8] sm:$0xff] %vm238, %v235
    %v241 = vld [vmem:[%s3] sm:$0xff]
    %v242 = vld [vmem:[%s3 + $0x8] sm:$0xff]
    %v243 = vld [vmem:[%s3 + $0x10] sm:$0xff]
    %v244 = vld [vmem:[%s3 + $0x18] sm:$0xff]
    %v245 = vld [vmem:[%s3 + $0x20] sm:$0xff]
    %v246 = vld [vmem:[%s3 + $0x28] sm:$0xff]
    %v247 = vld [vmem:[%s3 + $0x30] sm:$0x3]
    %s248 = sld [smem:[#allocation4]]
    %s249 = sadd.s32 %s248, 1
    // While loop
    $region26: #{tpu_custom_call.1} parent=1 // loop_pre_header
      _
    $region27: #{tpu_custom_call.1} parent=1 // loop_header
      %s251 = sphi 0, %s253
      %p252 = scmp.ge.s32.totalorder %s251, %s249
      %v256 = vphi 0.0, %v338
    $region28: #{tpu_custom_call.1} parent=1 // loop_header_branch
      %255 = sbr.rel (%p252) target = $region32
    $region29: #{tpu_custom_call.1} parent=1 // loop_body
      %s257 = smul.u32 %s251, 2
      %s258 = scalar_lea.vmem [#allocation2], %s257
      %v259 = vld [vmem:[%s258] sm:$0x3]
      %v261 = vsel %vm238, %v256, 0
      %vm263 = vcmask 1041408
      %v265 = vsel %vm263, %v247, 0
      %267 = vmatprep.subr.mxu0 0.0
      %268 = vmatpush1.msra.mxu0 %v241
      %269 = vmatprep.subr.mxu0 0.0
      %270 = vmatpush1.msra.mxu0 %v242
      %271 = vmatprep.subr.mxu0 0.0
      %272 = vmatpush1.msra.mxu0 %v243
      %273 = vmatprep.subr.mxu0 0.0
      %274 = vmatpush1.msra.mxu0 %v244
      %275 = vmatprep.subr.mxu0 0.0
      %276 = vmatpush1.msra.mxu0 %v245
      %277 = vmatprep.subr.mxu0 0.0
      %278 = vmatpush1.msra.mxu0 %v246
      %279 = vmatprep.subr.mxu0 0.0
      %280 = vmatpush1.msra.mxu0 %v265
      %281 = vmatprep.subr.mxu0 0.0
      %282 = vmatpush1.msra.mxu0 0.0
      %283 = vmatprep.subr.mxu0 0.0
      %284 = vmatpush1.msra.mxu0 0.0
      %285 = vmatprep.subr.mxu0 0.0
      %286 = vmatpush1.msra.mxu0 0.0
      %287 = vmatprep.subr.mxu0 0.0
      %288 = vmatpush1.msra.mxu0 0.0
      %289 = vmatprep.subr.mxu0 0.0
      %290 = vmatpush1.msra.mxu0 0.0
      %291 = vmatprep.subr.mxu0 0.0
      %292 = vmatpush1.msra.mxu0 0.0
      %293 = vmatprep.subr.mxu0 0.0
      %294 = vmatpush1.msra.mxu0 0.0
      %295 = vmatprep.subr.mxu0 0.0
      %296 = vmatpush1.msra.mxu0 0.0
      %297 = vmatprep.subr.mxu0 0.0
      %298 = vmatpush1.msra.mxu0 0.0
      %299 = vmatprep.subr.mxu0 0.0
      %300 = vmatpush1.msra.mxu0 0.0
      %301 = vmatprep.subr.mxu0 0.0
      %302 = vmatpush1.msra.mxu0 0.0
      %303 = vmatprep.subr.mxu0 0.0
      %304 = vmatpush1.msra.mxu0 0.0
      %305 = vmatprep.subr.mxu0 0.0
      %306 = vmatpush1.msra.mxu0 0.0
      %307 = vmatprep.subr.mxu0 0.0
      %308 = vmatpush1.msra.mxu0 0.0
      %309 = vmatprep.subr.mxu0 0.0
      %310 = vmatpush1.msra.mxu0 0.0
      %311 = vmatprep.subr.mxu0 0.0
      %312 = vmatpush1.msra.mxu0 0.0
      %313 = vmatprep.subr.mxu0 0.0
      %314 = vmatpush1.msra.mxu0 0.0
      %315 = vmatprep.subr.mxu0 0.0
      %316 = vmatpush1.msra.mxu0 0.0
      %317 = vmatprep.subr.mxu0 0.0
      %318 = vmatpush1.msra.mxu0 0.0
      %319 = vmatprep.subr.mxu0 0.0
      %320 = vmatpush1.msra.mxu0 0.0
      %321 = vmatprep.subr.mxu0 0.0
      %322 = vmatpush1.msra.mxu0 0.0
      %323 = vmatprep.subr.mxu0 0.0
      %324 = vmatpush1.msra.mxu0 0.0
      %325 = vmatprep.subr.mxu0 0.0
      %326 = vmatpush1.msra.mxu0 0.0
      %327 = vmatprep.subr.mxu0 0.0
      %328 = vmatpush1.msra.mxu0 0.0
      %329 = vmatprep.subr.mxu0 0.0
      %330 = vmatpush1.msra.mxu0 0.0
      %331 = vmatprep.mubr.f32.mxu0 0.0
      %332 = vmatmul.mubr.f32.gmra.mrb[0].mxu0 %v261
      %v333 = vpop.f32.mrb[0].mxu0
      %v334 = vadd.f32 0.0, %v333
      %v335 = vpop.f32.mrb[0].mxu0
      %336 = vdwg.mxu0
      %v337 = vadd.f32 %v259, %v334
      %v338 = vtanh.pop %v337
    $region30: #{tpu_custom_call.1} parent=1 // loop_footer
      %s253 = sadd.s32 %s251, 1
    $region31: #{tpu_custom_call.1} parent=1 // loop_footer_branch
      %250 = sbr.rel target = $region27
    $region32: #{tpu_custom_call.1} parent=1 // loop_exit
      _
    %v339 = vld [vmem:[%s5] sm:$0xff]
    %v340 = vld [vmem:[%s5 + $0x8] sm:$0xff]
    %v341 = vld [vmem:[%s5 + $0x10] sm:$0xff]
    %v342 = vld [vmem:[%s5 + $0x18] sm:$0xff]
    %v343 = vld [vmem:[%s5 + $0x20] sm:$0xff]
    %v344 = vld [vmem:[%s5 + $0x28] sm:$0xff]
    %v345 = vld [vmem:[%s5 + $0x30] sm:$0x3]
    %v346 = vld [vmem:[%s6] sm:$0x1]
    %v348 = vlaneseq
    %v349 = vshrl.u32 %v348, 7
    %v350 = vsub.s32 0, %v349
    %v351 = vrot.slane %v346, %v350
    %v354 = vsel %vm238, %v256, 0
    %vm356 = vcmask 1041408
    %v358 = vsel %vm356, %v345, 0
    %360 = vmatprep.subr.mxu0 0.0
    %361 = vmatpush1.msra.mxu0 %v339
    %362 = vmatprep.subr.mxu0 0.0
    %363 = vmatpush1.msra.mxu0 %v340
    %364 = vmatprep.subr.mxu0 0.0
    %365 = vmatpush1.msra.mxu0 %v341
    %366 = vmatprep.subr.mxu0 0.0
    %367 = vmatpush1.msra.mxu0 %v342
    %368 = vmatprep.subr.mxu0 0.0
    %369 = vmatpush1.msra.mxu0 %v343
    %370 = vmatprep.subr.mxu0 0.0
    %371 = vmatpush1.msra.mxu0 %v344
    %372 = vmatprep.subr.mxu0 0.0
    %373 = vmatpush1.msra.mxu0 %v358
    %374 = vmatprep.subr.mxu0 0.0
    %375 = vmatpush1.msra.mxu0 0.0
    %376 = vmatprep.subr.mxu0 0.0
    %377 = vmatpush1.msra.mxu0 0.0
    %378 = vmatprep.subr.mxu0 0.0
    %379 = vmatpush1.msra.mxu0 0.0
    %380 = vmatprep.subr.mxu0 0.0
    %381 = vmatpush1.msra.mxu0 0.0
    %382 = vmatprep.subr.mxu0 0.0
    %383 = vmatpush1.msra.mxu0 0.0
    %384 = vmatprep.subr.mxu0 0.0
    %385 = vmatpush1.msra.mxu0 0.0
    %386 = vmatprep.subr.mxu0 0.0
    %387 = vmatpush1.msra.mxu0 0.0
    %388 = vmatprep.subr.mxu0 0.0
    %389 = vmatpush1.msra.mxu0 0.0
    %390 = vmatprep.subr.mxu0 0.0
    %391 = vmatpush1.msra.mxu0 0.0
    %392 = vmatprep.subr.mxu0 0.0
    %393 = vmatpush1.msra.mxu0 0.0
    %394 = vmatprep.subr.mxu0 0.0
    %395 = vmatpush1.msra.mxu0 0.0
    %396 = vmatprep.subr.mxu0 0.0
    %397 = vmatpush1.msra.mxu0 0.0
    %398 = vmatprep.subr.mxu0 0.0
    %399 = vmatpush1.msra.mxu0 0.0
    %400 = vmatprep.subr.mxu0 0.0
    %401 = vmatpush1.msra.mxu0 0.0
    %402 = vmatprep.subr.mxu0 0.0
    %403 = vmatpush1.msra.mxu0 0.0
    %404 = vmatprep.subr.mxu0 0.0
    %405 = vmatpush1.msra.mxu0 0.0
    %406 = vmatprep.subr.mxu0 0.0
    %407 = vmatpush1.msra.mxu0 0.0
    %408 = vmatprep.subr.mxu0 0.0
    %409 = vmatpush1.msra.mxu0 0.0
    %410 = vmatprep.subr.mxu0 0.0
    %411 = vmatpush1.msra.mxu0 0.0
    %412 = vmatprep.subr.mxu0 0.0
    %413 = vmatpush1.msra.mxu0 0.0
    %414 = vmatprep.subr.mxu0 0.0
    %415 = vmatpush1.msra.mxu0 0.0
    %416 = vmatprep.subr.mxu0 0.0
    %417 = vmatpush1.msra.mxu0 0.0
    %418 = vmatprep.subr.mxu0 0.0
    %419 = vmatpush1.msra.mxu0 0.0
    %420 = vmatprep.subr.mxu0 0.0
    %421 = vmatpush1.msra.mxu0 0.0
    %422 = vmatprep.subr.mxu0 0.0
    %423 = vmatpush1.msra.mxu0 0.0
    %424 = vmatprep.mubr.f32.mxu0 0.0
    %425 = vmatmul.mubr.f32.gmra.mrb[0].mxu0 %v354
    %v426 = vpop.f32.mrb[0].mxu0
    %v427 = vadd.f32 %v351, %v426
    %v428 = vpop.f32.mrb[0].mxu0
    %429 = vdwg.mxu0
    %vm430 = vcmask 25600
    %431 = vst.msk [vmem:[#allocation5] sm:$0x3] %vm430, %v427
    // Predicated region
    $region33: #{tpu_custom_call.1} parent=1 // pred_check
      _
    $region34: #{tpu_custom_call.1} parent=1 // pred_check_branch
      %433 = sbr.rel (0) target = $region36
    $region35: #{tpu_custom_call.1} parent=1 // pred_region
      %s435 = ssub.s32 32, 32
      %436 = vsyncadd [#allocation6], %s435
      %s438 = sshll.u32 [#allocation5], 4
      %s439 = int_to_ptr.vmem [resolvable:$true] %s438
      %441 = dma.vmem_to_hbm [thread:$0]  %s439, 32, %s7, [#allocation6]
    $region36: #{tpu_custom_call.1} parent=1 // pred_fallthru
      _
    // Predicated region
    $region37: #{tpu_custom_call.1} parent=1 // pred_check
      _
    $region38: #{tpu_custom_call.1} parent=1 // pred_check_branch
      %443 = sbr.rel (0) target = $region40
    $region39: #{tpu_custom_call.1} parent=1 // pred_region
      %444 = dma.done [#allocation6], 32
    $region40: #{tpu_custom_call.1} parent=1 // pred_fallthru
      _
    %445 = vsyncpa [#allocation6], 1

</llo_original>
